<compile_context>
chip_gen: v7x
topology: tpu7x:2x2x1
jax: 0.10.0
libtpu: 0.0.40
codegen_flags: <defaults>
</compile_context>

<pallas_src>
import math
from functools import partial

import jax
import jax.numpy as jnp
from jax.experimental import pallas as pl
from jax.experimental.pallas import tpu as pltpu


# ----------------------------------------------------------------------------
# Helpers
# ----------------------------------------------------------------------------
def _round_up(x: int, m: int) -> int:
    return ((x + m - 1) // m) * m


def _pick_tm(M: int, K: int, D: int, in_bytes: int, out_bytes: int,
             budget_bytes: int) -> int:
    """Largest M-tile (multiple of 8, capped at 1024) whose double-buffered
    VMEM working set fits the budget."""
    m8 = _round_up(max(M, 1), 8)
    for cand in (1024, 512, 256, 128, 64, 32, 16, 8):
        tm = min(cand, m8)
        need = (2 * tm * K * in_bytes        # patches block, double-buffered
                + 2 * K * D * in_bytes       # resident weight (conservative x2)
                + 2 * tm * D * out_bytes     # output block, double-buffered
                + 8 * D * 4)                 # bias / gamma / beta (f32)
        if need <= budget_bytes:
            return tm
    return 8


# ----------------------------------------------------------------------------
# Fused kernel:  out = LayerNorm_channels( patches @ W + b ) * gamma + beta
#   grid = (M_pad // tm,)  -- one full-K matmul per step, weight stays resident.
# ----------------------------------------------------------------------------
def _patch_embed_kernel(x_ref, w_ref, b_ref, g_ref, beta_ref, o_ref, *, eps):
    # MXU matmul: bf16 operands, f32 accumulation.
    y = jnp.dot(x_ref[...], w_ref[...], preferred_element_type=jnp.float32)
    y = y + b_ref[...]                                     # conv bias (f32)
    mu = jnp.mean(y, axis=-1, keepdims=True)
    var = jnp.mean(jnp.square(y - mu), axis=-1, keepdims=True)
    yn = (y - mu) * jax.lax.rsqrt(var + eps)               # matches x/sqrt(s+eps)
    o_ref[...] = (g_ref[...] * yn + beta_ref[...]).astype(o_ref.dtype)


def patch_embed_matmul_ln(patches, w, b, gamma, beta, eps=1e-6,
                          out_dtype=jnp.float32):
    """patches: (M, K) bf16/f32, w: (K, D), b/gamma/beta: (D,) -> (M, D) out_dtype."""
    M, K = patches.shape
    D = w.shape[1]
    in_bytes = jnp.dtype(patches.dtype).itemsize
    out_bytes = jnp.dtype(out_dtype).itemsize

    # Keep the working set well under the 32 MiB default scoped VMEM limit
    # (valid on v5e/v6e/v7x alike).
    budget = 24 * 1024 * 1024
    tm = _pick_tm(M, K, D, in_bytes, out_bytes, budget)

    # Ragged-M handling: pad tokens to a multiple of tm, slice off afterwards.
    M_pad = _round_up(M, tm)
    if M_pad != M:
        patches = jnp.pad(patches, ((0, M_pad - M), (0, 0)))
    grid = (M_pad // tm,)

    kernel = partial(_patch_embed_kernel, eps=eps)
    out = pl.pallas_call(
        kernel,
        out_shape=jax.ShapeDtypeStruct((M_pad, D), out_dtype),
        grid_spec=pltpu.PrefetchScalarGridSpec(
            num_scalar_prefetch=0,
            grid=grid,
            in_specs=[
                pl.BlockSpec((tm, K), lambda i: (i, 0)),   # patches (streamed)
                pl.BlockSpec((K, D), lambda i: (0, 0)),    # weight (resident)
                pl.BlockSpec((1, D), lambda i: (0, 0)),    # conv bias
                pl.BlockSpec((1, D), lambda i: (0, 0)),    # LN gamma
                pl.BlockSpec((1, D), lambda i: (0, 0)),    # LN beta
            ],
            out_specs=pl.BlockSpec((tm, D), lambda i: (i, 0)),
        ),
        compiler_params=pltpu.CompilerParams(
            dimension_semantics=("parallel",),
            vmem_limit_bytes=32 * 1024 * 1024,   # safe on v7x (64 MiB physical)
        ),
    )(patches, w, b.reshape(1, D), gamma.reshape(1, D), beta.reshape(1, D))

    return out[:M] if M_pad != M else out


# ----------------------------------------------------------------------------
# Module wrapper (parameters + patchify glue in plain JAX)
# ----------------------------------------------------------------------------
class PatchEmbedPallas:
    def __init__(self, img_size=16, patch_size=8, in_chans=4, embed_dim=32,
                 eps=1e-6, key=None):
        assert img_size % patch_size == 0
        self.img_size = img_size
        self.patch_size = patch_size
        self.in_chans = in_chans
        self.embed_dim = embed_dim
        self.grid_size = img_size // patch_size
        self.num_patches = self.grid_size * self.grid_size
        self.eps = eps

        key = jax.random.PRNGKey(42) if key is None else key
        kw, kb, kg, kbe = jax.random.split(key, 4)

        fan_in = in_chans * patch_size * patch_size
        bound = 1.0 / math.sqrt(fan_in)
        # Conv weight in PyTorch layout (OIHW) and the matmul layout (K, D).
        self.conv_w = jax.random.uniform(
            kw, (embed_dim, in_chans, patch_size, patch_size), jnp.float32, -bound, bound)
        self.w = self.conv_w.reshape(embed_dim, fan_in).T            # (K, D) f32
        self.w_bf16 = self.w.astype(jnp.bfloat16)                    # MXU operand
        self.b = jax.random.uniform(kb, (embed_dim,), jnp.float32, -bound, bound)
        # LayerNorm2d params (randomized here so the affine path is exercised).
        self.gamma = 1.0 + 0.1 * jax.random.normal(kg, (embed_dim,), jnp.float32)
        self.beta = 0.1 * jax.random.normal(kbe, (embed_dim,), jnp.float32)

    def _patchify(self, x):
        B, C, H, W = x.shape
        p = self.patch_size
        Hp, Wp = H // p, W // p
        patches = x.reshape(B, C, Hp, p, Wp, p)
        patches = jnp.transpose(patches, (0, 2, 4, 1, 3, 5))
        return patches.reshape(B * Hp * Wp, C * p * p), (B, Hp, Wp)

    def __call__(self, x):
        """x: (B, C, H, W) -> (B, embed_dim, H//p, W//p), matching PyTorch."""
        patches, (B, Hp, Wp) = self._patchify(x)
        out = patch_embed_matmul_ln(
            patches.astype(jnp.bfloat16), self.w_bf16, self.b,
            self.gamma, self.beta, self.eps, out_dtype=jnp.float32)    # (M, D)
        out = out.reshape(B, Hp, Wp, self.embed_dim)
        return jnp.transpose(out, (0, 3, 1, 2))                       # (B, D, Hp, Wp)


# ----------------------------------------------------------------------------
# References for verification
# ----------------------------------------------------------------------------
def reference_matched(mod: PatchEmbedPallas, x):
    """Same math as the kernel (bf16 operands, f32 accum) in plain JAX."""
    patches, (B, Hp, Wp) = mod._patchify(x)
    y = jnp.dot(patches.astype(jnp.bfloat16), mod.w_bf16,
                preferred_element_type=jnp.float32)
    y = y + mod.b[None, :]
    mu = jnp.mean(y, axis=-1, keepdims=True)
    var = jnp.mean(jnp.square(y - mu), axis=-1, keepdims=True)
    yn = (y - mu) * jax.lax.rsqrt(var + mod.eps)
    out = mod.gamma[None, :] * yn + mod.beta[None, :]
    out = out.reshape(B, Hp, Wp, mod.embed_dim)
    return jnp.transpose(out, (0, 3, 1, 2))


def reference_conv_f32(mod: PatchEmbedPallas, x):
    """Full-f32 PyTorch-equivalent forward (Conv2d + LayerNorm2d)."""
    p = mod.patch_size
    y = jax.lax.conv_general_dilated(
        x, mod.conv_w, window_strides=(p, p), padding="VALID",
        dimension_numbers=("NCHW", "OIHW", "NCHW"))
    y = y + mod.b[None, :, None, None]
    u = jnp.mean(y, axis=1, keepdims=True)
    s = jnp.mean((y - u) ** 2, axis=1, keepdims=True)
    y = (y - u) / jnp.sqrt(s + mod.eps)
    return mod.gamma[None, :, None, None] * y + mod.beta[None, :, None, None]


if __name__ == "__main__":
    # Small shapes consistent with PatchEmbed.forward:
    #   x: (B=2, in_chans=4, 16, 16), patch_size=8, embed_dim=32
    #   -> K = 4*8*8 = 256, M = 2*2*2 = 8 tokens, output (2, 32, 2, 2)
    B, C, S = 2, 4, 16
    PATCH, EMBED = 8, 32

    key = jax.random.PRNGKey(0)
    kx, kp = jax.random.split(key)
    x = jax.random.normal(kx, (B, C, S, S), jnp.float32)

    mod = PatchEmbedPallas(img_size=S, patch_size=PATCH, in_chans=C,
                           embed_dim=EMBED, key=kp)

    out = mod(x)
    out = jax.block_until_ready(out)

    assert out.shape == (B, EMBED, S // PATCH, S // PATCH)

    # Tight check against the bf16-matched reference (validates the fused kernel).
    ref_m = reference_matched(mod, x)
    assert jnp.allclose(out, ref_m, atol=2e-3, rtol=2e-3), "mismatch vs matched ref"

    # Loose check against the full-f32 conv reference (validates module semantics;
    # tolerance accounts for bf16 MXU operands).
    ref_f = reference_conv_f32(mod, x)
    assert jnp.allclose(out, ref_f, atol=1e-1, rtol=1e-1), "mismatch vs f32 conv ref"

    print("KERNEL_OK")
</pallas_src>

<mosaic_0001>
module attributes {stable_mosaic.version = 11 : i64} {
  func.func @_patch_embed_kernel(%arg0: i32, %arg1: memref<8x256xbf16, #tpu.memory_space<vmem>>, %arg2: memref<256x32xbf16, #tpu.memory_space<vmem>>, %arg3: memref<1x32xf32, #tpu.memory_space<vmem>>, %arg4: memref<1x32xf32, #tpu.memory_space<vmem>>, %arg5: memref<1x32xf32, #tpu.memory_space<vmem>>, %arg6: memref<8x32xf32, #tpu.memory_space<vmem>>) attributes {dimension_semantics = [#tpu.dimension_semantics<parallel>], iteration_bounds = array<i64: 1>, scalar_prefetch = 0 : i64, scratch_operands = 0 : i64, tpu.core_type = #tpu.core_type<tc>, window_params = [{transform_indices = @transform_0, window_bounds = array<i64: 8, 256>}, {pipeline_mode = #tpu.pipeline_mode<synchronous>, transform_indices = @transform_1, window_bounds = array<i64: 256, 32>}, {pipeline_mode = #tpu.pipeline_mode<synchronous>, transform_indices = @transform_2, window_bounds = array<i64: 1, 32>}, {pipeline_mode = #tpu.pipeline_mode<synchronous>, transform_indices = @transform_3, window_bounds = array<i64: 1, 32>}, {pipeline_mode = #tpu.pipeline_mode<synchronous>, transform_indices = @transform_4, window_bounds = array<i64: 1, 32>}, {transform_indices = @transform_5, window_bounds = array<i64: 8, 32>}]} {
    %c0 = arith.constant 0 : index
    %c0_0 = arith.constant 0 : index
    %0 = vector.load %arg1[%c0, %c0_0] : memref<8x256xbf16, #tpu.memory_space<vmem>>, vector<8x256xbf16>
    %c0_1 = arith.constant 0 : index
    %c0_2 = arith.constant 0 : index
    %1 = vector.load %arg2[%c0_1, %c0_2] : memref<256x32xbf16, #tpu.memory_space<vmem>>, vector<256x32xbf16>
    %cst = arith.constant dense<0.000000e+00> : vector<8x32xf32>
    %2 = tpu.matmul %0, %1, %cst {dimension_numbers = #tpu.dot_dimension_numbers<[1], [0], [0], [1], [0, 0, 1, 1], [], []>} : vector<8x256xbf16>, vector<256x32xbf16>, vector<8x32xf32> -> vector<8x32xf32>
    %c0_3 = arith.constant 0 : index
    %c0_4 = arith.constant 0 : index
    %3 = vector.load %arg3[%c0_3, %c0_4] : memref<1x32xf32, #tpu.memory_space<vmem>>, vector<1x32xf32>
    %4 = vector.broadcast %3 : vector<1x32xf32> to vector<8x32xf32>
    %5 = arith.addf %2, %4 : vector<8x32xf32>
    %cst_5 = arith.constant dense<0.000000e+00> : vector<8xf32>
    %6 = vector.multi_reduction <add>, %5, %cst_5 [1] : vector<8x32xf32> to vector<8xf32>
    %7 = vector.shape_cast %6 : vector<8xf32> to vector<8x1xf32>
    %cst_6 = arith.constant 3.200000e+01 : f32
    %8 = vector.broadcast %cst_6 : f32 to vector<8x1xf32>
    %9 = arith.divf %7, %8 : vector<8x1xf32>
    %10 = vector.broadcast %9 : vector<8x1xf32> to vector<8x32xf32>
    %11 = arith.subf %5, %10 : vector<8x32xf32>
    %12 = arith.mulf %11, %11 : vector<8x32xf32>
    %cst_7 = arith.constant dense<0.000000e+00> : vector<8xf32>
    %13 = vector.multi_reduction <add>, %12, %cst_7 [1] : vector<8x32xf32> to vector<8xf32>
    %14 = vector.shape_cast %13 : vector<8xf32> to vector<8x1xf32>
    %cst_8 = arith.constant 3.200000e+01 : f32
    %15 = vector.broadcast %cst_8 : f32 to vector<8x1xf32>
    %16 = arith.divf %14, %15 : vector<8x1xf32>
    %17 = vector.broadcast %9 : vector<8x1xf32> to vector<8x32xf32>
    %18 = arith.subf %5, %17 : vector<8x32xf32>
    %cst_9 = arith.constant 9.99999997E-7 : f32
    %19 = vector.broadcast %cst_9 : f32 to vector<8x1xf32>
    %20 = arith.addf %16, %19 : vector<8x1xf32>
    %21 = math.rsqrt %20 : vector<8x1xf32>
    %22 = vector.broadcast %21 : vector<8x1xf32> to vector<8x32xf32>
    %23 = arith.mulf %18, %22 : vector<8x32xf32>
    %c0_10 = arith.constant 0 : index
    %c0_11 = arith.constant 0 : index
    %24 = vector.load %arg4[%c0_10, %c0_11] : memref<1x32xf32, #tpu.memory_space<vmem>>, vector<1x32xf32>
    %25 = vector.broadcast %24 : vector<1x32xf32> to vector<8x32xf32>
    %26 = arith.mulf %25, %23 : vector<8x32xf32>
    %c0_12 = arith.constant 0 : index
    %c0_13 = arith.constant 0 : index
    %27 = vector.load %arg5[%c0_12, %c0_13] : memref<1x32xf32, #tpu.memory_space<vmem>>, vector<1x32xf32>
    %28 = vector.broadcast %27 : vector<1x32xf32> to vector<8x32xf32>
    %29 = arith.addf %26, %28 : vector<8x32xf32>
    %c0_14 = arith.constant 0 : index
    %c0_15 = arith.constant 0 : index
    %30 = vector.load %arg6[%c0_14, %c0_15] : memref<8x32xf32, #tpu.memory_space<vmem>>, vector<8x32xf32>
    tpu.vector_store %arg6[%c0_14, %c0_15], %29 {strides = array<i32>} : memref<8x32xf32, #tpu.memory_space<vmem>>, vector<8x32xf32>,
    return
  }
  func.func @transform_0(%arg0: i32) -> (i32, i32) {
    %c0_i32 = arith.constant 0 : i32
    %c0_i32_0 = arith.constant 0 : i32
    return %arg0, %c0_i32 : i32, i32
  }
  func.func @transform_1(%arg0: i32) -> (i32, i32) {
    %c0_i32 = arith.constant 0 : i32
    %c0_i32_0 = arith.constant 0 : i32
    %c0_i32_1 = arith.constant 0 : i32
    return %c0_i32, %c0_i32_0 : i32, i32
  }
  func.func @transform_2(%arg0: i32) -> (i32, i32) {
    %c0_i32 = arith.constant 0 : i32
    %c0_i32_0 = arith.constant 0 : i32
    %c0_i32_1 = arith.constant 0 : i32
    return %c0_i32, %c0_i32_0 : i32, i32
  }
  func.func @transform_3(%arg0: i32) -> (i32, i32) {
    %c0_i32 = arith.constant 0 : i32
    %c0_i32_0 = arith.constant 0 : i32
    %c0_i32_1 = arith.constant 0 : i32
    return %c0_i32, %c0_i32_0 : i32, i32
  }
  func.func @transform_4(%arg0: i32) -> (i32, i32) {
    %c0_i32 = arith.constant 0 : i32
    %c0_i32_0 = arith.constant 0 : i32
    %c0_i32_1 = arith.constant 0 : i32
    return %c0_i32, %c0_i32_0 : i32, i32
  }
  func.func @transform_5(%arg0: i32) -> (i32, i32) {
    %c0_i32 = arith.constant 0 : i32
    %c0_i32_0 = arith.constant 0 : i32
    return %arg0, %c0_i32 : i32, i32
  }
}

</mosaic_0001>

<llo_original>
// kernel: tpu_custom_call.1
$region0: #{tpu_custom_call.1}
  #allocation0 [shape = 'u32[]', space=smem, size = 0x4, offset = 0x4, fixed_abs, tag = 'smem constant byte address 0x4 - core index']
  #allocation1 [shape = 'u32[144,128]{1,0:T(1,128)}', space=vmem, size = 0x12000, scoped, tag = 'internal scratch']
  %s0 = inlined_call_operand.vmem [shape: bf16[8,256], index: 0, kind: input, shape index: {}]
  %s1 = inlined_call_operand.vmem [shape: bf16[256,32], index: 1, kind: input, shape index: {}]
  %s2 = inlined_call_operand.vmem [shape: f32[1,32], index: 2, kind: input, shape index: {}]
  %s3 = inlined_call_operand.vmem [shape: f32[1,32], index: 3, kind: input, shape index: {}]
  %s4 = inlined_call_operand.vmem [shape: f32[1,32], index: 4, kind: input, shape index: {}]
  %s5 = inlined_call_operand.hbm [shape: f32[8,32], index: 5, kind: output, shape index: {}]
  %s6 = sld [smem:[#allocation0]]
  $region30: #{tpu_custom_call.1} parent=0
    _
  %s8 = ssub.s32 1, %s6
  %s9 = scalar_select 0, %s8, %s6
  $region1: #{tpu_custom_call.1} parent=0
    #allocation2 [shape = 'u8[4096]{0}', space=vmem, size = 0x1000, scoped, tag = 'output window, operand 0, single buffered']
    #allocation3 [shape = 's32[1]{0}', space=sflag, size = 0x4, scoped, tag = 'scoped memory for tpu_custom_call.1']
    %10 = vsyncpa [#allocation3], 0
    // Predicated region
    $region2: #{tpu_custom_call.1} parent=1 // pred_check
      _
    $region3: #{tpu_custom_call.1} parent=1 // pred_check_branch
      %12 = sbr.rel (0) target = $region5
    $region4: #{tpu_custom_call.1} parent=1 // pred_region
      _
    $region5: #{tpu_custom_call.1} parent=1 // pred_fallthru
      _
    // Predicated region
    $region6: #{tpu_custom_call.1} parent=1 // pred_check
      _
    $region7: #{tpu_custom_call.1} parent=1 // pred_check_branch
      %14 = sbr.rel (0) target = $region9
    $region8: #{tpu_custom_call.1} parent=1 // pred_region
      _
    $region9: #{tpu_custom_call.1} parent=1 // pred_fallthru
      _
    // Predicated region
    $region10: #{tpu_custom_call.1} parent=1 // pred_check
      _
    $region11: #{tpu_custom_call.1} parent=1 // pred_check_branch
      %16 = sbr.rel (0) target = $region13
    $region12: #{tpu_custom_call.1} parent=1 // pred_region
      _
    $region13: #{tpu_custom_call.1} parent=1 // pred_fallthru
      _
    // Predicated region
    $region14: #{tpu_custom_call.1} parent=1 // pred_check
      _
    $region15: #{tpu_custom_call.1} parent=1 // pred_check_branch
      %18 = sbr.rel (0) target = $region17
    $region16: #{tpu_custom_call.1} parent=1 // pred_region
      _
    $region17: #{tpu_custom_call.1} parent=1 // pred_fallthru
      _
    // Predicated region
    $region18: #{tpu_custom_call.1} parent=1 // pred_check
      _
    $region19: #{tpu_custom_call.1} parent=1 // pred_check_branch
      %20 = sbr.rel (0) target = $region21
    $region20: #{tpu_custom_call.1} parent=1 // pred_region
      _
    $region21: #{tpu_custom_call.1} parent=1 // pred_fallthru
      _
    %v22 = vld [vmem:[%s0] sm:$0xff]
    %v23 = vld [vmem:[%s1] sm:$0xf]
    %v24 = vld [vmem:[%s1 + $0x4] sm:$0xf]
    %v25 = vld [vmem:[%s1 + $0x8] sm:$0xf]
    %v26 = vld [vmem:[%s1 + $0xc] sm:$0xf]
    %v27 = vld [vmem:[%s1 + $0x10] sm:$0xf]
    %v28 = vld [vmem:[%s1 + $0x14] sm:$0xf]
    %v29 = vld [vmem:[%s1 + $0x18] sm:$0xf]
    %v30 = vld [vmem:[%s1 + $0x1c] sm:$0xf]
    %v31 = vld [vmem:[%s1 + $0x20] sm:$0xf]
    %v32 = vld [vmem:[%s1 + $0x24] sm:$0xf]
    %v33 = vld [vmem:[%s1 + $0x28] sm:$0xf]
    %v34 = vld [vmem:[%s1 + $0x2c] sm:$0xf]
    %v35 = vld [vmem:[%s1 + $0x30] sm:$0xf]
    %v36 = vld [vmem:[%s1 + $0x34] sm:$0xf]
    %v37 = vld [vmem:[%s1 + $0x38] sm:$0xf]
    %v38 = vld [vmem:[%s1 + $0x3c] sm:$0xf]
    %v39 = vld [vmem:[%s1 + $0x40] sm:$0xf]
    %v40 = vld [vmem:[%s1 + $0x44] sm:$0xf]
    %v41 = vld [vmem:[%s1 + $0x48] sm:$0xf]
    %v42 = vld [vmem:[%s1 + $0x4c] sm:$0xf]
    %v43 = vld [vmem:[%s1 + $0x50] sm:$0xf]
    %v44 = vld [vmem:[%s1 + $0x54] sm:$0xf]
    %v45 = vld [vmem:[%s1 + $0x58] sm:$0xf]
    %v46 = vld [vmem:[%s1 + $0x5c] sm:$0xf]
    %v47 = vld [vmem:[%s1 + $0x60] sm:$0xf]
    %v48 = vld [vmem:[%s1 + $0x64] sm:$0xf]
    %v49 = vld [vmem:[%s1 + $0x68] sm:$0xf]
    %v50 = vld [vmem:[%s1 + $0x6c] sm:$0xf]
    %v51 = vld [vmem:[%s1 + $0x70] sm:$0xf]
    %v52 = vld [vmem:[%s1 + $0x74] sm:$0xf]
    %v53 = vld [vmem:[%s1 + $0x78] sm:$0xf]
    %v54 = vld [vmem:[%s1 + $0x7c] sm:$0xf]
    %v55 = vld [vmem:[%s2] sm:$0x1]
    %v57 = vlaneseq
    %v58 = vshrl.u32 %v57, 7
    %v59 = vsub.s32 0, %v58
    %v60 = vrot.slane %v55, %v59
    %v63 = vunpack.c.l.b16 %v22
    %v64 = vunpack.c.h.b16 %v22
    %v65 = vpack.c.b16 %v63, %v63
    %v66 = vpack.c.b16 %v64, %v64
    %v101 = vunpack.c.l.b16 %v23
    %v102 = vunpack.c.l.b16 %v24
    %v103 = vunpack.c.l.b16 %v25
    %v104 = vunpack.c.l.b16 %v26
    %v105 = vunpack.c.l.b16 %v27
    %v106 = vunpack.c.l.b16 %v28
    %v107 = vunpack.c.l.b16 %v29
    %v108 = vunpack.c.l.b16 %v30
    %v109 = vunpack.c.l.b16 %v31
    %v110 = vunpack.c.l.b16 %v32
    %v111 = vunpack.c.l.b16 %v33
    %v112 = vunpack.c.l.b16 %v34
    %v113 = vunpack.c.l.b16 %v35
    %v114 = vunpack.c.l.b16 %v36
    %v115 = vunpack.c.l.b16 %v37
    %v116 = vunpack.c.l.b16 %v38
    %v117 = vunpack.c.l.b16 %v39
    %v118 = vunpack.c.l.b16 %v40
    %v119 = vunpack.c.l.b16 %v41
    %v120 = vunpack.c.l.b16 %v42
    %v121 = vunpack.c.l.b16 %v43
    %v122 = vunpack.c.l.b16 %v44
    %v123 = vunpack.c.l.b16 %v45
    %v124 = vunpack.c.l.b16 %v46
    %v125 = vunpack.c.l.b16 %v47
    %v126 = vunpack.c.l.b16 %v48
    %v127 = vunpack.c.l.b16 %v49
    %v128 = vunpack.c.l.b16 %v50
    %v129 = vunpack.c.l.b16 %v51
    %v130 = vunpack.c.l.b16 %v52
    %v131 = vunpack.c.l.b16 %v53
    %v132 = vunpack.c.l.b16 %v54
    %v133 = vpack.c.b16 %v102, %v101
    %v134 = vpack.c.b16 %v104, %v103
    %v135 = vpack.c.b16 %v106, %v105
    %v136 = vpack.c.b16 %v108, %v107
    %v137 = vpack.c.b16 %v110, %v109
    %v138 = vpack.c.b16 %v112, %v111
    %v139 = vpack.c.b16 %v114, %v113
    %v140 = vpack.c.b16 %v116, %v115
    %v141 = vpack.c.b16 %v118, %v117
    %v142 = vpack.c.b16 %v120, %v119
    %v143 = vpack.c.b16 %v122, %v121
    %v144 = vpack.c.b16 %v124, %v123
    %v145 = vpack.c.b16 %v126, %v125
    %v146 = vpack.c.b16 %v128, %v127
    %v147 = vpack.c.b16 %v130, %v129
    %v148 = vpack.c.b16 %v132, %v131
    %165 = vmatprep.subr.bf16.mxu0 0
    %166 = vmatpush1.bf16.msra.mxu0 %v133
    %167 = vmatprep.subr.bf16.mxu0 0
    %168 = vmatpush1.bf16.msra.mxu0 %v134
    %169 = vmatprep.subr.bf16.mxu0 0
    %170 = vmatpush1.bf16.msra.mxu0 %v135
    %171 = vmatprep.subr.bf16.mxu0 0
    %172 = vmatpush1.bf16.msra.mxu0 %v136
    %173 = vmatprep.subr.bf16.mxu0 0
    %174 = vmatpush1.bf16.msra.mxu0 %v137
    %175 = vmatprep.subr.bf16.mxu0 0
    %176 = vmatpush1.bf16.msra.mxu0 %v138
    %177 = vmatprep.subr.bf16.mxu0 0
    %178 = vmatpush1.bf16.msra.mxu0 %v139
    %179 = vmatprep.subr.bf16.mxu0 0
    %180 = vmatpush1.bf16.msra.mxu0 %v140
    %181 = vmatprep.subr.bf16.mxu0 0
    %182 = vmatpush1.bf16.msra.mxu0 %v141
    %183 = vmatprep.subr.bf16.mxu0 0
    %184 = vmatpush1.bf16.msra.mxu0 %v142
    %185 = vmatprep.subr.bf16.mxu0 0
    %186 = vmatpush1.bf16.msra.mxu0 %v143
    %187 = vmatprep.subr.bf16.mxu0 0
    %188 = vmatpush1.bf16.msra.mxu0 %v144
    %189 = vmatprep.subr.bf16.mxu0 0
    %190 = vmatpush1.bf16.msra.mxu0 %v145
    %191 = vmatprep.subr.bf16.mxu0 0
    %192 = vmatpush1.bf16.msra.mxu0 %v146
    %193 = vmatprep.subr.bf16.mxu0 0
    %194 = vmatpush1.bf16.msra.mxu0 %v147
    %195 = vmatprep.subr.bf16.mxu0 0
    %196 = vmatpush1.bf16.msra.mxu0 %v148
    %197 = vmatprep.mubr.bf16.mxu0 %v66
    %198 = vmatmul.mubr.bf16.gmra.mrb[0].mxu0 %v65
    %v199 = vpop.f32.mrb[0].mxu0
    %v200 = vadd.f32 %v60, %v199
    %v201 = vpop.f32.mrb[0].mxu0
    %v202 = vpop.f32.mrb[0].mxu0
    %v203 = vpop.f32.mrb[0].mxu0
    %204 = vdwg.mxu0
    %vm205 = vcmask 261120
    %v206 = vsel %vm205, %v200, 0.0
    %207 = vadd.xlane.f32.xlu0 %v206
    %v208 = vpop.xlane.xlu0 %207
    %v209 = vrcp.pop 32.0
    %v210 = vmul.f32 %v208, %v209
    %v211 = vsub.f32 %v200, %v210
    %v212 = vmul.f32 %v211, %v211
    %v213 = vsel %vm205, %v212, 0.0
    %214 = vadd.xlane.f32.xlu0 %v213
    %v215 = vpop.xlane.xlu0 %214
    %v216 = vmul.f32 %v215, %v209
    %v217 = vadd.f32 %v216, 1e-06
    %v218 = vrsqrt.pop %v217
    %v219 = vmul.f32 %v211, %v218
    %v220 = vld [vmem:[%s3] sm:$0x1]
    %v222 = vlaneseq
    %v223 = vshrl.u32 %v222, 7
    %v224 = vsub.s32 0, %v223
    %v225 = vrot.slane %v220, %v224
    %v227 = vmul.f32 %v225, %v219
    %v228 = vld [vmem:[%s4] sm:$0x1]
    %v230 = vlaneseq
    %v231 = vshrl.u32 %v230, 7
    %v232 = vsub.s32 0, %v231
    %v233 = vrot.slane %v228, %v232
    %v235 = vadd.f32 %v227, %v233
    %236 = vst.msk [vmem:[#allocation2] sm:$0xff] %vm205, %v235
    // Predicated region
    $region22: #{tpu_custom_call.1} parent=1 // pred_check
      _
    $region23: #{tpu_custom_call.1} parent=1 // pred_check_branch
      %238 = sbr.rel (0) target = $region25
    $region24: #{tpu_custom_call.1} parent=1 // pred_region
      %s240 = ssub.s32 128, 128
      %241 = vsyncadd [#allocation3], %s240
      %s243 = sshll.u32 [#allocation2], 4
      %s244 = int_to_ptr.vmem [resolvable:$true] %s243
      %246 = dma.vmem_to_hbm [thread:$0]  %s244, 128, %s5, [#allocation3]
    $region25: #{tpu_custom_call.1} parent=1 // pred_fallthru
      _
    // Predicated region
    $region26: #{tpu_custom_call.1} parent=1 // pred_check
      _
    $region27: #{tpu_custom_call.1} parent=1 // pred_check_branch
      %248 = sbr.rel (0) target = $region29
    $region28: #{tpu_custom_call.1} parent=1 // pred_region
      %249 = dma.done [#allocation3], 128
    $region29: #{tpu_custom_call.1} parent=1 // pred_fallthru
      _
    %250 = vsyncpa [#allocation3], 1

</llo_original>
